<compile_context>
chip_gen: v5e
topology: v5e:2x2
jax: 0.10.0
libtpu: 0.0.40
codegen_flags: <defaults>
</compile_context>

<pallas_src>
import functools

import jax
import jax.numpy as jnp
from jax import lax
from jax.experimental import pallas as pl
from jax.experimental.pallas import tpu as pltpu

_LANES = 128


def channel_attention_kernel(x_ref, w1t_ref, w2t_ref, o_ref,
                             sum_acc, max_acc, *, hw, hw_tile):
    # x_ref:   (1, C, T_HW)   one batch row, one spatial tile (native dtype)
    # w1t_ref: (C, Cr)        fc[0] weight transposed (1x1 conv C->Cr, no bias)
    # w2t_ref: (Cr, C)        fc[2] weight transposed (1x1 conv Cr->C, no bias)
    # o_ref:   (1, 1, C)      sigmoid(fc(avg) + fc(max)) for this batch row
    # sum_acc: (1, C, 128) f32  per-lane running sum   (reduced only at the end)
    # max_acc: (1, C, 128) f32  per-lane running max   (reduced only at the end)
    h = pl.program_id(1)
    last = pl.num_programs(1) - 1

    # Static tiling facts (hw, hw_tile are Python ints; hw_tile % 128 == 0).
    n_hw = -(-hw // hw_tile)
    rem = hw - (n_hw - 1) * hw_tile          # valid columns in the last tile
    chunks_full = hw_tile // _LANES          # 128-lane chunks in a full tile
    chunks_last = rem // _LANES              # fully-valid chunks in last tile
    tail = rem % _LANES                      # valid lanes of the partial chunk

    @pl.when(h == 0)
    def _init():
        sum_acc[...] = jnp.zeros_like(sum_acc)
        max_acc[...] = jnp.full_like(max_acc, -jnp.inf)

    def accum(n_chunks):
        # Elementwise (VALU-only) accumulation over 128-lane chunks:
        # no cross-lane reduce and no (1,C) relayout in the steady state.
        if n_chunks <= 0:
            return
        unroll = True if n_chunks <= 16 else 8

        def body(k, carry):
            start = pl.multiple_of(k * _LANES, _LANES)
            chunk = x_ref[:, :, pl.ds(start, _LANES)].astype(jnp.float32)
            sum_acc[...] += chunk
            max_acc[...] = jnp.maximum(max_acc[...], chunk)
            return carry

        lax.fori_loop(0, n_chunks, body, None, unroll=unroll)

    def accum_masked(start, n_valid):
        # Single ragged 128-lane chunk; mask built from a (1,1,128) lane iota
        # (padded VMEM contents beyond `hw` are unspecified, so mask them).
        chunk = x_ref[:, :, pl.ds(start, _LANES)].astype(jnp.float32)
        lane = lax.broadcasted_iota(jnp.int32, (1, 1, _LANES), 2)
        valid = lane < n_valid
        sum_acc[...] += jnp.where(valid, chunk, 0.0)
        max_acc[...] = jnp.maximum(max_acc[...],
                                   jnp.where(valid, chunk, -jnp.inf))

    if rem == hw_tile:
        # HW divides evenly into tiles: every step is identical, never masked.
        accum(chunks_full)
    else:
        @pl.when(h != last)
        def _steady():
            accum(chunks_full)

        @pl.when(h == last)
        def _ragged():
            accum(chunks_last)
            if tail:
                accum_masked(chunks_last * _LANES, tail)

    @pl.when(h == last)
    def _finalize():
        # Exactly one cross-lane (XLU) reduce per batch row.
        s = jnp.sum(sum_acc[...], axis=-1)                       # (1, C)
        m = jnp.max(max_acc[...], axis=-1)                       # (1, C)
        avg_p = s * (1.0 / hw)
        # Fuse the avg / max branches into one tiny matmul chain.
        p = jnp.concatenate([avg_p, m], axis=0)                  # (2, C)
        w1t = w1t_ref[...].astype(jnp.float32)                   # (C, Cr)
        w2t = w2t_ref[...].astype(jnp.float32)                   # (Cr, C)
        hid = jnp.maximum(
            jnp.dot(p, w1t, preferred_element_type=jnp.float32), 0.0)
        y = jnp.dot(hid, w2t, preferred_element_type=jnp.float32)
        att = jax.nn.sigmoid(y[0:1, :] + y[1:2, :])               # (1, C)
        o_ref[...] = att[None].astype(o_ref.dtype)                # (1, 1, C)


def _round_up(v, m):
    return -(-v // m) * m


def _vmem_capacity_bytes():
    try:
        info = pltpu.get_tpu_info()
        cap = getattr(info, "vmem_capacity_bytes", None)
        if cap:
            return int(cap)
    except Exception:
        pass
    return 128 * 1024 * 1024


def _choose_hw_tile(C, HW, itemsize, vmem_cap):
    """Byte-budgeted, lane-dense HW tile (multiple of 128, no 4096-lane cap).

    Per-buffer budget: ~4 MiB on v7x-class parts (<=64 MiB VMEM), ~8 MiB on
    v5e/v6e (128 MiB) -> double-buffered input footprint of 8 / 16 MiB.
    """
    budget = (4 << 20) if vmem_cap <= (64 << 20) else (8 << 20)
    t_max = max(_LANES, (budget // max(1, C * itemsize)) // _LANES * _LANES)
    if HW % _LANES == 0:
        return min(HW, t_max)
    if HW > t_max:
        return t_max
    # HW fits the budget but is ragged: largest 128-aligned tile <= HW, with
    # the small remainder masked in-kernel on the final grid step.
    # (For HW < 128 this returns 128 and relies on Pallas block padding.)
    return max(_LANES, (HW // _LANES) * _LANES)


def channel_attention(x, w1, w2, *, hw_tile=None):
    """x: (N, C, H, W); w1: (Cr, C) 1x1-conv weight; w2: (C, Cr) 1x1-conv weight.

    Returns sigmoid(fc(avg_pool(x)) + fc(max_pool(x))) with shape (N, C, 1, 1),
    matching the PyTorch ChannelAttention forward.
    """
    N, C, H, W = x.shape
    Cr = w1.shape[0]
    HW = H * W

    x3 = x.reshape(N, C, HW)
    w1t = jnp.transpose(w1)  # (C, Cr)
    w2t = jnp.transpose(w2)  # (Cr, C)

    vmem_cap = _vmem_capacity_bytes()
    if hw_tile is None:
        t_hw = _choose_hw_tile(C, HW, x.dtype.itemsize, vmem_cap)
    else:
        t_hw = _round_up(int(hw_tile), _LANES)
    n_hw = pl.cdiv(HW, t_hw)

    kernel = functools.partial(channel_attention_kernel, hw=HW, hw_tile=t_hw)

    # Right-sized scoped VMEM: ~1.5x the double-buffered estimate + margin.
    in_block = C * t_hw * x.dtype.itemsize
    weights = (C * Cr + Cr * C) * w1t.dtype.itemsize
    scratch = 2 * C * _LANES * 4
    out_blk = 2 * 1 * C * x.dtype.itemsize
    est = 2 * in_block + 2 * weights + out_blk + scratch
    vmem_limit = int(1.5 * est) + (2 << 20)
    vmem_limit = max(vmem_limit, 8 << 20)          # small safety floor
    vmem_limit = min(vmem_limit, vmem_cap // 2)    # never hog scoped VMEM

    out = pl.pallas_call(
        kernel,
        out_shape=jax.ShapeDtypeStruct((N, 1, C), x.dtype),
        grid_spec=pltpu.PrefetchScalarGridSpec(
            num_scalar_prefetch=0,
            grid=(N, n_hw),
            in_specs=[
                pl.BlockSpec((1, C, t_hw), lambda n, h: (n, 0, h)),
                pl.BlockSpec((C, Cr), lambda n, h: (0, 0)),   # resident weights
                pl.BlockSpec((Cr, C), lambda n, h: (0, 0)),   # resident weights
            ],
            out_specs=pl.BlockSpec((1, 1, C), lambda n, h: (n, 0, 0)),
            scratch_shapes=[
                pltpu.VMEM((1, C, _LANES), jnp.float32),   # per-lane running sum
                pltpu.VMEM((1, C, _LANES), jnp.float32),   # per-lane running max
            ],
        ),
        compiler_params=pltpu.CompilerParams(
            dimension_semantics=("parallel", "arbitrary"),
            vmem_limit_bytes=int(vmem_limit),
        ),
    )(x3, w1t, w2t)

    return out.reshape(N, C, 1, 1)


def _reference(x, w1, w2):
    # Pure-JAX reference mirroring the PyTorch forward.
    avg_p = jnp.mean(x, axis=(2, 3))                      # (N, C)
    max_p = jnp.max(x, axis=(2, 3))                       # (N, C)

    def fc(p):
        h = jnp.maximum(p @ w1.T, 0.0)
        return h @ w2.T

    return jax.nn.sigmoid(fc(avg_p) + fc(max_p))[:, :, None, None]


if __name__ == "__main__":
    # Small shapes consistent with the module: ratio=16 requires C % 16 == 0.
    N, C, H, W = 2, 32, 16, 16
    ratio = 16
    Cr = C // ratio

    key = jax.random.PRNGKey(0)
    kx, k1, k2, kx2 = jax.random.split(key, 4)

    x = jax.random.normal(kx, (N, C, H, W), dtype=jnp.float32)
    # Conv2d 1x1 (bias=False) weights: fc[0].weight (Cr, C), fc[2].weight (C, Cr).
    w1 = jax.random.normal(k1, (Cr, C), dtype=jnp.float32) * (1.0 / jnp.sqrt(C))
    w2 = jax.random.normal(k2, (C, Cr), dtype=jnp.float32) * (1.0 / jnp.sqrt(Cr))

    out = jax.block_until_ready(channel_attention(x, w1, w2))
    ref = _reference(x, w1, w2)
    assert out.shape == (N, C, 1, 1)
    assert jnp.allclose(out, ref, atol=1e-5, rtol=1e-5)

    # Exercise the multi-step HW pipeline + ragged-tail masked-chunk path
    # (HW = 400, tile = 128 -> 4 grid steps, last one masked to 16 valid lanes).
    H2, W2 = 20, 20
    x2 = jax.random.normal(kx2, (N, C, H2, W2), dtype=jnp.float32)
    out2 = jax.block_until_ready(channel_attention(x2, w1, w2, hw_tile=128))
    ref2 = _reference(x2, w1, w2)
    assert jnp.allclose(out2, ref2, atol=1e-5, rtol=1e-5)

    print("KERNEL_OK")
</pallas_src>

<mosaic_0001>
module attributes {stable_mosaic.version = 11 : i64} {
  func.func @channel_attention_kernel(%arg0: i32, %arg1: i32, %arg2: memref<1x32x256xf32, #tpu.memory_space<vmem>>, %arg3: memref<32x2xf32, #tpu.memory_space<vmem>>, %arg4: memref<2x32xf32, #tpu.memory_space<vmem>>, %arg5: memref<1x1x32xf32, #tpu.memory_space<vmem>>, %arg6: memref<1x32x128xf32, #tpu.memory_space<vmem>>, %arg7: memref<1x32x128xf32, #tpu.memory_space<vmem>>) attributes {dimension_semantics = [#tpu.dimension_semantics<parallel>, #tpu.dimension_semantics<arbitrary>], iteration_bounds = array<i64: 2, 1>, scalar_prefetch = 0 : i64, scratch_operands = 2 : i64, tpu.core_type = #tpu.core_type<tc>, window_params = [{transform_indices = @transform_0, window_bounds = array<i64: 1, 32, 256>}, {pipeline_mode = #tpu.pipeline_mode<synchronous>, transform_indices = @transform_1, window_bounds = array<i64: 32, 2>}, {pipeline_mode = #tpu.pipeline_mode<synchronous>, transform_indices = @transform_2, window_bounds = array<i64: 2, 32>}, {transform_indices = @transform_3, window_bounds = array<i64: 1, 1, 32>}]} {
    %c0_i32 = arith.constant 0 : i32
    %0 = arith.cmpi eq, %arg1, %c0_i32 : i32
    %1 = arith.extui %0 : i1 to i32
    %c0_i32_0 = arith.constant 0 : i32
    %2 = arith.cmpi ne, %1, %c0_i32_0 : i32
    scf.if %2 {
      %cst = arith.constant 0.000000e+00 : f32
      %26 = vector.broadcast %cst : f32 to vector<1x32x128xf32>
      %c0_32 = arith.constant 0 : index
      %c0_33 = arith.constant 0 : index
      %c0_34 = arith.constant 0 : index
      %27 = vector.load %arg6[%c0_32, %c0_33, %c0_34] : memref<1x32x128xf32, #tpu.memory_space<vmem>>, vector<1x32x128xf32>
      tpu.vector_store %arg6[%c0_32, %c0_33, %c0_34], %26 {strides = array<i32>} : memref<1x32x128xf32, #tpu.memory_space<vmem>>, vector<1x32x128xf32>,
      %cst_35 = arith.constant 0xFF800000 : f32
      %28 = vector.broadcast %cst_35 : f32 to vector<1x32x128xf32>
      %c0_36 = arith.constant 0 : index
      %c0_37 = arith.constant 0 : index
      %c0_38 = arith.constant 0 : index
      %29 = vector.load %arg7[%c0_36, %c0_37, %c0_38] : memref<1x32x128xf32, #tpu.memory_space<vmem>>, vector<1x32x128xf32>
      tpu.vector_store %arg7[%c0_36, %c0_37, %c0_38], %28 {strides = array<i32>} : memref<1x32x128xf32, #tpu.memory_space<vmem>>, vector<1x32x128xf32>,
    } else {
    }
    %c0_i32_1 = arith.constant 0 : i32
    %c128_i32 = arith.constant 128 : i32
    %3 = arith.muli %c0_i32_1, %c128_i32 : i32
    %4 = tpu.assume_multiple %3, 128 : i32
    %c0 = arith.constant 0 : index
    %c0_2 = arith.constant 0 : index
    %5 = arith.index_cast %4 : i32 to index
    %6 = vector.load %arg2[%c0, %c0_2, %5] : memref<1x32x256xf32, #tpu.memory_space<vmem>>, vector<1x32x128xf32>
    %c0_3 = arith.constant 0 : index
    %c0_4 = arith.constant 0 : index
    %c0_5 = arith.constant 0 : index
    %7 = vector.load %arg6[%c0_3, %c0_4, %c0_5] : memref<1x32x128xf32, #tpu.memory_space<vmem>>, vector<1x32x128xf32>
    %8 = arith.addf %7, %6 : vector<1x32x128xf32>
    %c0_6 = arith.constant 0 : index
    %c0_7 = arith.constant 0 : index
    %c0_8 = arith.constant 0 : index
    %9 = vector.load %arg6[%c0_6, %c0_7, %c0_8] : memref<1x32x128xf32, #tpu.memory_space<vmem>>, vector<1x32x128xf32>
    tpu.vector_store %arg6[%c0_6, %c0_7, %c0_8], %8 {strides = array<i32>} : memref<1x32x128xf32, #tpu.memory_space<vmem>>, vector<1x32x128xf32>,
    %c0_9 = arith.constant 0 : index
    %c0_10 = arith.constant 0 : index
    %c0_11 = arith.constant 0 : index
    %10 = vector.load %arg7[%c0_9, %c0_10, %c0_11] : memref<1x32x128xf32, #tpu.memory_space<vmem>>, vector<1x32x128xf32>
    %11 = arith.maximumf %10, %6 : vector<1x32x128xf32>
    %c0_12 = arith.constant 0 : index
    %c0_13 = arith.constant 0 : index
    %c0_14 = arith.constant 0 : index
    %12 = vector.load %arg7[%c0_12, %c0_13, %c0_14] : memref<1x32x128xf32, #tpu.memory_space<vmem>>, vector<1x32x128xf32>
    tpu.vector_store %arg7[%c0_12, %c0_13, %c0_14], %11 {strides = array<i32>} : memref<1x32x128xf32, #tpu.memory_space<vmem>>, vector<1x32x128xf32>,
    %c1_i32 = arith.constant 1 : i32
    %c128_i32_15 = arith.constant 128 : i32
    %13 = arith.muli %c1_i32, %c128_i32_15 : i32
    %14 = tpu.assume_multiple %13, 128 : i32
    %c0_16 = arith.constant 0 : index
    %c0_17 = arith.constant 0 : index
    %15 = arith.index_cast %14 : i32 to index
    %16 = vector.load %arg2[%c0_16, %c0_17, %15] : memref<1x32x256xf32, #tpu.memory_space<vmem>>, vector<1x32x128xf32>
    %c0_18 = arith.constant 0 : index
    %c0_19 = arith.constant 0 : index
    %c0_20 = arith.constant 0 : index
    %17 = vector.load %arg6[%c0_18, %c0_19, %c0_20] : memref<1x32x128xf32, #tpu.memory_space<vmem>>, vector<1x32x128xf32>
    %18 = arith.addf %17, %16 : vector<1x32x128xf32>
    %c0_21 = arith.constant 0 : index
    %c0_22 = arith.constant 0 : index
    %c0_23 = arith.constant 0 : index
    %19 = vector.load %arg6[%c0_21, %c0_22, %c0_23] : memref<1x32x128xf32, #tpu.memory_space<vmem>>, vector<1x32x128xf32>
    tpu.vector_store %arg6[%c0_21, %c0_22, %c0_23], %18 {strides = array<i32>} : memref<1x32x128xf32, #tpu.memory_space<vmem>>, vector<1x32x128xf32>,
    %c0_24 = arith.constant 0 : index
    %c0_25 = arith.constant 0 : index
    %c0_26 = arith.constant 0 : index
    %20 = vector.load %arg7[%c0_24, %c0_25, %c0_26] : memref<1x32x128xf32, #tpu.memory_space<vmem>>, vector<1x32x128xf32>
    %21 = arith.maximumf %20, %16 : vector<1x32x128xf32>
    %c0_27 = arith.constant 0 : index
    %c0_28 = arith.constant 0 : index
    %c0_29 = arith.constant 0 : index
    %22 = vector.load %arg7[%c0_27, %c0_28, %c0_29] : memref<1x32x128xf32, #tpu.memory_space<vmem>>, vector<1x32x128xf32>
    tpu.vector_store %arg7[%c0_27, %c0_28, %c0_29], %21 {strides = array<i32>} : memref<1x32x128xf32, #tpu.memory_space<vmem>>, vector<1x32x128xf32>,
    %c2_i32 = arith.constant 2 : i32
    %c0_i32_30 = arith.constant 0 : i32
    %23 = arith.cmpi eq, %arg1, %c0_i32_30 : i32
    %24 = arith.extui %23 : i1 to i32
    %c0_i32_31 = arith.constant 0 : i32
    %25 = arith.cmpi ne, %24, %c0_i32_31 : i32
    scf.if %25 {
      %c0_32 = arith.constant 0 : index
      %c0_33 = arith.constant 0 : index
      %c0_34 = arith.constant 0 : index
      %26 = vector.load %arg6[%c0_32, %c0_33, %c0_34] : memref<1x32x128xf32, #tpu.memory_space<vmem>>, vector<1x32x128xf32>
      %cst = arith.constant dense<0.000000e+00> : vector<1x32xf32>
      %27 = vector.multi_reduction <add>, %26, %cst [2] : vector<1x32x128xf32> to vector<1x32xf32>
      %c0_35 = arith.constant 0 : index
      %c0_36 = arith.constant 0 : index
      %c0_37 = arith.constant 0 : index
      %28 = vector.load %arg7[%c0_35, %c0_36, %c0_37] : memref<1x32x128xf32, #tpu.memory_space<vmem>>, vector<1x32x128xf32>
      %cst_38 = arith.constant dense<0xFF800000> : vector<1x32xf32>
      %29 = vector.multi_reduction <maximumf>, %28, %cst_38 [2] : vector<1x32x128xf32> to vector<1x32xf32>
      %cst_39 = arith.constant 3.906250e-03 : f32
      %30 = vector.broadcast %cst_39 : f32 to vector<1x32xf32>
      %31 = arith.mulf %27, %30 : vector<1x32xf32>
      %32 = tpu.concatenate %31, %29 in 0 : vector<1x32xf32>, vector<1x32xf32> -> vector<2x32xf32>
      %c0_40 = arith.constant 0 : index
      %c0_41 = arith.constant 0 : index
      %33 = vector.load %arg3[%c0_40, %c0_41] : memref<32x2xf32, #tpu.memory_space<vmem>>, vector<32x2xf32>
      %c0_42 = arith.constant 0 : index
      %c0_43 = arith.constant 0 : index
      %34 = vector.load %arg4[%c0_42, %c0_43] : memref<2x32xf32, #tpu.memory_space<vmem>>, vector<2x32xf32>
      %cst_44 = arith.constant dense<0.000000e+00> : vector<2x2xf32>
      %35 = tpu.matmul %32, %33, %cst_44 {dimension_numbers = #tpu.dot_dimension_numbers<[1], [0], [0], [1], [0, 0, 1, 1], [], []>} : vector<2x32xf32>, vector<32x2xf32>, vector<2x2xf32> -> vector<2x2xf32>
      %cst_45 = arith.constant 0.000000e+00 : f32
      %36 = vector.broadcast %cst_45 : f32 to vector<2x2xf32>
      %37 = arith.maximumf %35, %36 : vector<2x2xf32>
      %cst_46 = arith.constant dense<0.000000e+00> : vector<2x32xf32>
      %38 = tpu.matmul %37, %34, %cst_46 {dimension_numbers = #tpu.dot_dimension_numbers<[1], [0], [0], [1], [0, 0, 1, 1], [], []>} : vector<2x2xf32>, vector<2x32xf32>, vector<2x32xf32> -> vector<2x32xf32>
      %39 = vector.extract_strided_slice %38 {offsets = [0, 0], sizes = [1, 32], strides = [1, 1]} : vector<2x32xf32> to vector<1x32xf32>
      %40 = vector.extract_strided_slice %38 {offsets = [1, 0], sizes = [1, 32], strides = [1, 1]} : vector<2x32xf32> to vector<1x32xf32>
      %41 = arith.addf %39, %40 : vector<1x32xf32>
      %42 = arith.negf %41 : vector<1x32xf32>
      %43 = math.exp %42 : vector<1x32xf32>
      %cst_47 = arith.constant 1.000000e+00 : f32
      %44 = vector.broadcast %cst_47 : f32 to vector<1x32xf32>
      %45 = arith.addf %44, %43 : vector<1x32xf32>
      %46 = arith.divf %44, %45 : vector<1x32xf32>
      %47 = vector.shape_cast %46 : vector<1x32xf32> to vector<1x1x32xf32>
      %c0_48 = arith.constant 0 : index
      %c0_49 = arith.constant 0 : index
      %c0_50 = arith.constant 0 : index
      %48 = vector.load %arg5[%c0_48, %c0_49, %c0_50] : memref<1x1x32xf32, #tpu.memory_space<vmem>>, vector<1x1x32xf32>
      tpu.vector_store %arg5[%c0_48, %c0_49, %c0_50], %47 {strides = array<i32>} : memref<1x1x32xf32, #tpu.memory_space<vmem>>, vector<1x1x32xf32>,
    } else {
    }
    return
  }
  func.func @transform_0(%arg0: i32, %arg1: i32) -> (i32, i32, i32) {
    %c0_i32 = arith.constant 0 : i32
    %c0_i32_0 = arith.constant 0 : i32
    return %arg0, %c0_i32, %arg1 : i32, i32, i32
  }
  func.func @transform_1(%arg0: i32, %arg1: i32) -> (i32, i32) {
    %c0_i32 = arith.constant 0 : i32
    %c0_i32_0 = arith.constant 0 : i32
    %c0_i32_1 = arith.constant 0 : i32
    return %c0_i32, %c0_i32_0 : i32, i32
  }
  func.func @transform_2(%arg0: i32, %arg1: i32) -> (i32, i32) {
    %c0_i32 = arith.constant 0 : i32
    %c0_i32_0 = arith.constant 0 : i32
    %c0_i32_1 = arith.constant 0 : i32
    return %c0_i32, %c0_i32_0 : i32, i32
  }
  func.func @transform_3(%arg0: i32, %arg1: i32) -> (i32, i32, i32) {
    %c0_i32 = arith.constant 0 : i32
    %c0_i32_0 = arith.constant 0 : i32
    %c0_i32_1 = arith.constant 0 : i32
    return %arg0, %c0_i32, %c0_i32_0 : i32, i32, i32
  }
}

</mosaic_0001>

<llo_original>
// kernel: tpu_custom_call.1
$region0: #{tpu_custom_call.1}
  #allocation0 [shape = 'u32[]', space=smem, size = 0x4, offset = 0x4, fixed_abs, tag = 'smem constant byte address 0x4 - core index']
  #allocation1 [shape = 'u32[72,128]{1,0:T(1,128)}', space=vmem, size = 0x9000, scoped, tag = 'internal scratch']
  #allocation2 [shape = 'f32[1,32,128]{2,1,0:T(8,128)}', space=vmem, size = 0x4000, scoped, tag = 'scratch operand']
  #allocation3 [shape = 'f32[1,32,128]{2,1,0:T(8,128)}', space=vmem, size = 0x4000, scoped, tag = 'scratch operand']
  %s0 = inlined_call_operand.hbm [shape: f32[2,32,256], index: 0, kind: input, shape index: {}]
  %s1 = inlined_call_operand.vmem [shape: f32[32,2], index: 1, kind: input, shape index: {}]
  %s2 = inlined_call_operand.vmem [shape: f32[2,32], index: 2, kind: input, shape index: {}]
  %s3 = inlined_call_operand.hbm [shape: f32[2,1,32], index: 3, kind: output, shape index: {}]
  %s4 = sld [smem:[#allocation0]]
  $region57: #{tpu_custom_call.1} parent=0
    _
  %s6 = ssub.s32 1, %s4
  %s7 = scalar_select 0, %s6, %s4
  $region1: #{tpu_custom_call.1} parent=0
    #allocation4 [shape = 'u8[65536]{0}', space=vmem, size = 0x10000, scoped, tag = 'input window, operand 0']
    #allocation5 [shape = 's32[2]{0}', space=sflag, size = 0x8, scoped, tag = 'scoped memory for tpu_custom_call.1']
    #allocation6 [shape = 's32[2]{0}', space=sflag, size = 0x8, scoped, tag = 'scoped memory for tpu_custom_call.1']
    #allocation7 [shape = 'u8[1024]{0}', space=vmem, size = 0x400, scoped, tag = 'output window, operand 0']
    %8 = vsyncpa [#allocation5], 0
    %s9 = scalar_lea.sflag [#allocation5], 1
    %10 = vsyncpa %s9, 0
    %11 = vsyncpa [#allocation6], 0
    %s12 = scalar_lea.sflag [#allocation6], 1
    %13 = vsyncpa %s12, 0
    loop: start=0, step=1, limit=4
    $region2: #{tpu_custom_call.1} parent=1 // loop_pre_header
      _
    $region3: #{tpu_custom_call.1} parent=1 // loop_header
      %s15 = sphi 0, %s19
      %p16 = scmp.ge.s32.totalorder %s15, 4
      %s22 = sphi 0, %s34
      %s23 = sphi 0, %s30
      %s24 = sphi 0, %s22
      %s25 = sphi 0, %s23
      %s26 = sphi 0, %s24
      %s27 = sphi 0, %s25
      %s39 = sphi 0, %s41
      %s42 = sphi 0, %s39
      %s43 = sphi 0, %s42
      %s59 = sphi 0, %s43
      %s63 = sphi 0, %s63
      %s65 = sphi 0, %s63
      %s66 = sphi 0, %s65
      %s80 = sphi 0, %s66
      %s84 = sphi 0, %s84
      %s86 = sphi 0, %s84
      %s87 = sphi 0, %s86
      %s101 = sphi 0, %s87
      %s107 = sphi 0, %s109
      %s110 = sphi 0, %s107
      %s111 = sphi 0, %s110
      %s127 = sphi 0, %s111
    $region4: #{tpu_custom_call.1} parent=1 // loop_header_branch
      %18 = sbr.rel (%p16) target = $region8
    $region5: #{tpu_custom_call.1} parent=1 // loop_body
      %s20 = ssub.s32 %s15, 1
      %s21 = ssub.s32 %s15, 2
      %s28 = sadd.s32 1, %s23
      %p29 = scmp.ge.s32.totalorder %s28, 1
      %s30 = scalar_select %p29, 0, %s28
      %s31 = sadd.s32 1, %s22
      %s32 = scalar_select %p29, %s31, %s22
      %p33 = scmp.ge.s32.totalorder %s32, 2
      %s34 = scalar_select %p33, 0, %s32
      %s35 = ssub.s32 %s22, %s34
      %s36 = ssub.s32 %s23, %s30
      %s37 = sor.u32 %s35, %s36
      %p38 = scmp.eq.s32.totalorder %s37, 0
      %s40 = sadd.s32 %s39, 1
      %s41 = scalar_select %p38, %s39, %s40
      %p44 = pneg %p38
      %p45 = scmp.eq.s32.totalorder %s15, 1
      %p46 = por %p44, %p45
      %p47 = scmp.ne.s32.totalorder %s39, %s42
      %p48 = scmp.eq.s32.totalorder %s15, 0
      %p49 = por %p47, %p48
      %p50 = scmp.ne.s32.totalorder %s39, %s42
      %p51 = scmp.eq.s32.totalorder %s20, 1
      %p52 = por %p50, %p51
      %p53 = scmp.ne.s32.totalorder %s42, %s43
      %p54 = scmp.eq.s32.totalorder %s20, 0
      %p55 = por %p53, %p54
      %p56 = scmp.ne.s32.totalorder %s42, %s43
      %p57 = scmp.eq.s32.totalorder %s21, 1
      %p58 = por %p56, %p57
      %p60 = scmp.ne.s32.totalorder %s43, %s59
      %p61 = scmp.eq.s32.totalorder %s21, 0
      %p62 = por %p60, %p61
      %s64 = sadd.s32 %s63, 1
      %p67 = scmp.eq.s32.totalorder %s15, 1
      %p68 = scmp.ne.s32.totalorder %s63, %s65
      %p69 = scmp.eq.s32.totalorder %s15, 0
      %p70 = por %p68, %p69
      %p71 = scmp.ne.s32.totalorder %s63, %s65
      %p72 = scmp.eq.s32.totalorder %s20, 1
      %p73 = por %p71, %p72
      %p74 = scmp.ne.s32.totalorder %s65, %s66
      %p75 = scmp.eq.s32.totalorder %s20, 0
      %p76 = por %p74, %p75
      %p77 = scmp.ne.s32.totalorder %s65, %s66
      %p78 = scmp.eq.s32.totalorder %s21, 1
      %p79 = por %p77, %p78
      %p81 = scmp.ne.s32.totalorder %s66, %s80
      %p82 = scmp.eq.s32.totalorder %s21, 0
      %p83 = por %p81, %p82
      %s85 = sadd.s32 %s84, 1
      %p88 = scmp.eq.s32.totalorder %s15, 1
      %p89 = scmp.ne.s32.totalorder %s84, %s86
      %p90 = scmp.eq.s32.totalorder %s15, 0
      %p91 = por %p89, %p90
      %p92 = scmp.ne.s32.totalorder %s84, %s86
      %p93 = scmp.eq.s32.totalorder %s20, 1
      %p94 = por %p92, %p93
      %p95 = scmp.ne.s32.totalorder %s86, %s87
      %p96 = scmp.eq.s32.totalorder %s20, 0
      %p97 = por %p95, %p96
      %p98 = scmp.ne.s32.totalorder %s86, %s87
      %p99 = scmp.eq.s32.totalorder %s21, 1
      %p100 = por %p98, %p99
      %p102 = scmp.ne.s32.totalorder %s87, %s101
      %p103 = scmp.eq.s32.totalorder %s21, 0
      %p104 = por %p102, %p103
      %s105 = ssub.s32 %s22, %s34
      %p106 = scmp.eq.s32.totalorder %s105, 0
      %s108 = sadd.s32 %s107, 1
      %s109 = scalar_select %p106, %s107, %s108
      %p112 = pneg %p106
      %p113 = scmp.eq.s32.totalorder %s15, 1
      %p114 = por %p112, %p113
      %p115 = scmp.ne.s32.totalorder %s107, %s110
      %p116 = scmp.eq.s32.totalorder %s15, 0
      %p117 = por %p115, %p116
      %p118 = scmp.ne.s32.totalorder %s107, %s110
      %p119 = scmp.eq.s32.totalorder %s20, 1
      %p120 = por %p118, %p119
      %p121 = scmp.ne.s32.totalorder %s110, %s111
      %p122 = scmp.eq.s32.totalorder %s20, 0
      %p123 = por %p121, %p122
      %p124 = scmp.ne.s32.totalorder %s110, %s111
      %p125 = scmp.eq.s32.totalorder %s21, 1
      %p126 = por %p124, %p125
      %p128 = scmp.ne.s32.totalorder %s111, %s127
      %p129 = scmp.eq.s32.totalorder %s21, 0
      %p130 = por %p128, %p129
      %p131 = scmp.le.s32.totalorder 1, %s15
      %p132 = scmp.lt.s32.totalorder %s15, 3
      %p133 = pnand %p131, %p132
      %p134 = pneg %p133
      // Predicated region
      $region9: #{tpu_custom_call.1} parent=5 // pred_check
        _
      $region10: #{tpu_custom_call.1} parent=5 // pred_check_branch
        %136 = sbr.rel (%p133) target = $region12
      $region11: #{tpu_custom_call.1} parent=5 // pred_region
        %s137 = ssub.s32 %s15, 1
        // Predicated region
        $region13: #{tpu_custom_call.1} parent=11 // pred_check
          %p138 = pneg %p76
        $region14: #{tpu_custom_call.1} parent=11 // pred_check_branch
          %140 = sbr.rel (%p138) target = $region16
        $region15: #{tpu_custom_call.1} parent=11 // pred_region
          _
        $region16: #{tpu_custom_call.1} parent=11 // pred_fallthru
          _
        // Predicated region
        $region17: #{tpu_custom_call.1} parent=11 // pred_check
          %p141 = pneg %p97
        $region18: #{tpu_custom_call.1} parent=11 // pred_check_branch
          %143 = sbr.rel (%p141) target = $region20
        $region19: #{tpu_custom_call.1} parent=11 // pred_region
          _
        $region20: #{tpu_custom_call.1} parent=11 // pred_fallthru
          _
      $region12: #{tpu_custom_call.1} parent=5 // pred_fallthru
        _
      %p144 = scmp.lt.s32.totalorder %s15, 2
      // Predicated region
      $region21: #{tpu_custom_call.1} parent=5 // pred_check
        %p145 = pneg %p144
      $region22: #{tpu_custom_call.1} parent=5 // pred_check_branch
        %147 = sbr.rel (%p145) target = $region24
      $region23: #{tpu_custom_call.1} parent=5 // pred_region
        // Predicated region
        $region25: #{tpu_custom_call.1} parent=23 // pred_check
          %p148 = pneg %p49
        $region26: #{tpu_custom_call.1} parent=23 // pred_check_branch
          %150 = sbr.rel (%p148) target = $region28
        $region27: #{tpu_custom_call.1} parent=23 // pred_region
          %s151 = sand.u32 %s39, 1
          %s152 = scalar_lea.sflag [#allocation5], %s151
          %s153 = sand.u32 %s39, 1
          %s154 = smul.addr %s153, 64
          %s155 = scalar_lea.vmem [#allocation4], %s154
          %s156 = smul.u32 2, %s23
          %158 = vsyncadd %s152, 0
          %s159 = smul.addr %s22, 8
          %s160 = sadd.s32 %s156, %s159
          %s161 = smul.addr %s160, 8
          %s162 = scalar_lea.hbm %s0, %s161
          %s163 = sshll.u32 %s162, 4
          %s164 = int_to_ptr.hbm [resolvable:$true] %s163
          %s165 = sshll.u32 %s155, 4
          %s166 = int_to_ptr.vmem [resolvable:$true] %s165
          %171 = dma.hbm_to_vmem [thread:$0]  %s164, 1024, %s166, %s152, 256, 256, 16
        $region28: #{tpu_custom_call.1} parent=23 // pred_fallthru
          _
      $region24: #{tpu_custom_call.1} parent=5 // pred_fallthru
        _
      %p172 = scmp.le.s32.totalorder 1, %s15
      %p173 = scmp.lt.s32.totalorder %s15, 3
      %p174 = pnand %p172, %p173
      %p175 = pneg %p174
      // Predicated region
      $region29: #{tpu_custom_call.1} parent=5 // pred_check
        _
      $region30: #{tpu_custom_call.1} parent=5 // pred_check_branch
        %177 = sbr.rel (%p174) target = $region32
      $region31: #{tpu_custom_call.1} parent=5 // pred_region
        %s178 = ssub.s32 %s15, 1
        %s179 = sand.u32 %s42, 1
        %s180 = scalar_lea.sflag [#allocation5], %s179
        %s181 = sand.u32 %s42, 1
        %s182 = smul.addr %s181, 64
        %s183 = scalar_lea.vmem [#allocation4], %s182
        // Predicated region
        $region33: #{tpu_custom_call.1} parent=31 // pred_check
          %p184 = pneg %p55
        $region34: #{tpu_custom_call.1} parent=31 // pred_check_branch
          %186 = sbr.rel (%p184) target = $region36
        $region35: #{tpu_custom_call.1} parent=31 // pred_region
          %188 = dma.done %s180, 1024
        $region36: #{tpu_custom_call.1} parent=31 // pred_fallthru
          _
        %s189 = sand.u32 %s42, 1
        %s190 = scalar_lea.sflag [#allocation5], %s189
        %s191 = sand.u32 %s42, 1
        %s192 = smul.addr %s191, 64
        %s193 = scalar_lea.vmem [#allocation4], %s192
        %p194 = pneg %p55
        %p195 = pneg %p52
        %p196 = pneg %p76
        %p197 = pneg %p73
        %p198 = pneg %p97
        %p199 = pneg %p94
        %p200 = pneg %p123
        %p201 = pneg %p120
        %s202 = sand.u32 %s110, 1
        %s203 = scalar_lea.sflag [#allocation6], %s202
        %s204 = sand.u32 %s110, 1
        %s205 = scalar_lea.vmem [#allocation7], %s204
        %s206 = smul.u32 2, %s25
        %p207 = scmp.eq.s32.totalorder %s25, 0
        // Predicated region
        $region37: #{tpu_custom_call.1} parent=31 // pred_check
          %p208 = pneg %p207
        $region38: #{tpu_custom_call.1} parent=31 // pred_check_branch
          %210 = sbr.rel (%p208) target = $region40
        $region39: #{tpu_custom_call.1} parent=31 // pred_region
          %211 = vst [vmem:[#allocation2] sm:$0xff] 0.0
          %212 = vst [vmem:[#allocation2 + $0x8] sm:$0xff] 0.0
          %213 = vst [vmem:[#allocation2 + $0x10] sm:$0xff] 0.0
          %214 = vst [vmem:[#allocation2 + $0x18] sm:$0xff] 0.0
          %215 = vst [vmem:[#allocation3] sm:$0xff] -inf
          %216 = vst [vmem:[#allocation3 + $0x8] sm:$0xff] -inf
          %217 = vst [vmem:[#allocation3 + $0x10] sm:$0xff] -inf
          %218 = vst [vmem:[#allocation3 + $0x18] sm:$0xff] -inf
        $region40: #{tpu_custom_call.1} parent=31 // pred_fallthru
          _
        %v219 = vld [vmem:[%s183] sm:$0xff]
        %v220 = vld [vmem:[%s183 + $0x10] sm:$0xff]
        %v221 = vld [vmem:[%s183 + $0x20] sm:$0xff]
        %v222 = vld [vmem:[%s183 + $0x30] sm:$0xff]
        %v223 = vld [vmem:[#allocation2] sm:$0xff]
        %v224 = vld [vmem:[#allocation2 + $0x8] sm:$0xff]
        %v225 = vld [vmem:[#allocation2 + $0x10] sm:$0xff]
        %v226 = vld [vmem:[#allocation2 + $0x18] sm:$0xff]
        %v227 = vadd.f32 %v223, %v219
        %v228 = vadd.f32 %v224, %v220
        %v229 = vadd.f32 %v225, %v221
        %v230 = vadd.f32 %v226, %v222
        %231 = vst [vmem:[#allocation2] sm:$0xff] %v227
        %232 = vst [vmem:[#allocation2 + $0x8] sm:$0xff] %v228
        %233 = vst [vmem:[#allocation2 + $0x10] sm:$0xff] %v229
        %234 = vst [vmem:[#allocation2 + $0x18] sm:$0xff] %v230
        %v235 = vld [vmem:[#allocation3] sm:$0xff]
        %v236 = vld [vmem:[#allocation3 + $0x8] sm:$0xff]
        %v237 = vld [vmem:[#allocation3 + $0x10] sm:$0xff]
        %v238 = vld [vmem:[#allocation3 + $0x18] sm:$0xff]
        %v239 = vmax.f32 %v235, %v219
        %v240 = vmax.f32 %v236, %v220
        %v241 = vmax.f32 %v237, %v221
        %v242 = vmax.f32 %v238, %v222
        %243 = vst [vmem:[#allocation3] sm:$0xff] %v239
        %244 = vst [vmem:[#allocation3 + $0x8] sm:$0xff] %v240
        %245 = vst [vmem:[#allocation3 + $0x10] sm:$0xff] %v241
        %246 = vst [vmem:[#allocation3 + $0x18] sm:$0xff] %v242
        %s247 = scalar_lea.vmem %s183, 8 [#allocation4]
        %v248 = vld [vmem:[%s247] sm:$0xff]
        %v249 = vld [vmem:[%s247 + $0x10] sm:$0xff]
        %v250 = vld [vmem:[%s247 + $0x20] sm:$0xff]
        %v251 = vld [vmem:[%s247 + $0x30] sm:$0xff]
        %v252 = vld [vmem:[#allocation2] sm:$0xff]
        %v253 = vld [vmem:[#allocation2 + $0x8] sm:$0xff]
        %v254 = vld [vmem:[#allocation2 + $0x10] sm:$0xff]
        %v255 = vld [vmem:[#allocation2 + $0x18] sm:$0xff]
        %v256 = vadd.f32 %v252, %v248
        %v257 = vadd.f32 %v253, %v249
        %v258 = vadd.f32 %v254, %v250
        %v259 = vadd.f32 %v255, %v251
        %260 = vst [vmem:[#allocation2] sm:$0xff] %v256
        %261 = vst [vmem:[#allocation2 + $0x8] sm:$0xff] %v257
        %262 = vst [vmem:[#allocation2 + $0x10] sm:$0xff] %v258
        %263 = vst [vmem:[#allocation2 + $0x18] sm:$0xff] %v259
        %v264 = vld [vmem:[#allocation3] sm:$0xff]
        %v265 = vld [vmem:[#allocation3 + $0x8] sm:$0xff]
        %v266 = vld [vmem:[#allocation3 + $0x10] sm:$0xff]
        %v267 = vld [vmem:[#allocation3 + $0x18] sm:$0xff]
        %v268 = vmax.f32 %v264, %v248
        %v269 = vmax.f32 %v265, %v249
        %v270 = vmax.f32 %v266, %v250
        %v271 = vmax.f32 %v267, %v251
        %272 = vst [vmem:[#allocation3] sm:$0xff] %v268
        %273 = vst [vmem:[#allocation3 + $0x8] sm:$0xff] %v269
        %274 = vst [vmem:[#allocation3 + $0x10] sm:$0xff] %v270
        %275 = vst [vmem:[#allocation3 + $0x18] sm:$0xff] %v271
        // Predicated region
        $region41: #{tpu_custom_call.1} parent=31 // pred_check
          %p276 = pneg %p207
        $region42: #{tpu_custom_call.1} parent=31 // pred_check_branch
          %278 = sbr.rel (%p276) target = $region44
        $region43: #{tpu_custom_call.1} parent=31 // pred_region
          %v279 = vld [vmem:[#allocation2] sm:$0xff]
          %v280 = vld [vmem:[#allocation2 + $0x8] sm:$0xff]
          %v281 = vld [vmem:[#allocation2 + $0x10] sm:$0xff]
          %v282 = vld [vmem:[#allocation2 + $0x18] sm:$0xff]
          %283 = vadd.xlane.f32.xlu0 %v279
          %v284 = vpop.xlane.xlu0 %283
          %285 = vadd.xlane.f32.xlu0 %v280
          %v286 = vpop.xlane.xlu0 %285
          %287 = vadd.xlane.f32.xlu0 %v281
          %v288 = vpop.xlane.xlu0 %287
          %289 = vadd.xlane.f32.xlu0 %v282
          %v290 = vpop.xlane.xlu0 %289
          %v291 = vld [vmem:[#allocation3] sm:$0xff]
          %v292 = vld [vmem:[#allocation3 + $0x8] sm:$0xff]
          %v293 = vld [vmem:[#allocation3 + $0x10] sm:$0xff]
          %v294 = vld [vmem:[#allocation3 + $0x18] sm:$0xff]
          %295 = vmax.xlane.f32.xlu0 %v291
          %v296 = vpop.xlane.xlu0 %295
          %297 = vmax.xlane.f32.xlu0 %v292
          %v298 = vpop.xlane.xlu0 %297
          %299 = vmax.xlane.f32.xlu0 %v293
          %v300 = vpop.xlane.xlu0 %299
          %301 = vmax.xlane.f32.xlu0 %v294
          %v302 = vpop.xlane.xlu0 %301
          %v303 = vmul.f32 %v284, 0.00390625
          %v304 = vmul.f32 %v286, 0.00390625
          %v305 = vmul.f32 %v288, 0.00390625
          %v306 = vmul.f32 %v290, 0.00390625
          %v311 = vlaneseq
          %v312 = vand.u32 %v311, 127
          %v313 = vperm.slane %v303, %v312
          %v314 = vadd.s32 %v312, 4294967288
          %v315 = vperm.slane %v304, %v314
          %vm316 = vcmask 130112
          %v317 = vsel %vm316, %v315, %v313
          %v318 = vadd.s32 %v312, 4294967280
          %v319 = vperm.slane %v305, %v318
          %vm320 = vcmask 195712
          %v321 = vsel %vm320, %v319, %v317
          %v322 = vadd.s32 %v312, 4294967272
          %v323 = vperm.slane %v306, %v322
          %vm324 = vcmask 261312
          %v325 = vsel %vm324, %v323, %v321
          %v331 = vperm.slane %v296, %v312
          %v332 = vperm.slane %v298, %v314
          %v333 = vsel %vm316, %v332, %v331
          %v334 = vperm.slane %v300, %v318
          %v335 = vsel %vm320, %v334, %v333
          %v336 = vperm.slane %v302, %v322
          %v337 = vsel %vm324, %v336, %v335
          %vm339 = vcmask 1040384
          %v340 = vsel %vm339, %v325, %v337
          %v341 = vld [vmem:[%s1] sm:$0xff]
          %v342 = vld [vmem:[%s1 + $0x8] sm:$0xff]
          %v343 = vld [vmem:[%s1 + $0x10] sm:$0xff]
          %v344 = vld [vmem:[%s1 + $0x18] sm:$0xff]
          %v345 = vld [vmem:[%s2] sm:$0x3]
          %vm346 = vcmask 261120
          %v348 = vsel %vm346, %v340, 0
          %350 = vmatpush.msra.mxu0 0.0
          %351 = vmatpush.msra.mxu0 0.0
          %352 = vmatpush.msra.mxu0 0.0
          %353 = vmatpush.msra.mxu0 0.0
          %354 = vmatpush.msra.mxu0 0.0
          %355 = vmatpush.msra.mxu0 0.0
          %356 = vmatpush.msra.mxu0 0.0
          %357 = vmatpush.msra.mxu0 0.0
          %358 = vmatpush.msra.mxu0 0.0
          %359 = vmatpush.msra.mxu0 0.0
          %360 = vmatpush.msra.mxu0 0.0
          %361 = vmatpush.msra.mxu0 0.0
          %362 = vmatpush.msra.mxu0 %v344
          %363 = vmatpush.msra.mxu0 %v343
          %364 = vmatpush.msra.mxu0 %v342
          %365 = vmatpush.msra.mxu0 %v341
          %366 = vmatmul.f32.gmra.mxu0 %v348
          %v367 = vpop.f32.mrf.mxu0
          %v368 = vadd.f32 0.0, %v367
          %369 = vdwg.mxu0
          %v370 = vmax.f32 %v368, 0.0
          %vm371 = vcmask 15360
          %v373 = vsel %vm371, %v370, 0
          %vm375 = vcmask 1041408
          %v377 = vsel %vm375, %v345, 0
          %379 = vmatpush.msra.mxu0 0.0
          %380 = vmatpush.msra.mxu0 0.0
          %381 = vmatpush.msra.mxu0 0.0
          %382 = vmatpush.msra.mxu0 0.0
          %383 = vmatpush.msra.mxu0 0.0
          %384 = vmatpush.msra.mxu0 0.0
          %385 = vmatpush.msra.mxu0 0.0
          %386 = vmatpush.msra.mxu0 0.0
          %387 = vmatpush.msra.mxu0 0.0
          %388 = vmatpush.msra.mxu0 0.0
          %389 = vmatpush.msra.mxu0 0.0
          %390 = vmatpush.msra.mxu0 0.0
          %391 = vmatpush.msra.mxu0 0.0
          %392 = vmatpush.msra.mxu0 0.0
          %393 = vmatpush.msra.mxu0 0.0
          %394 = vmatpush.msra.mxu0 %v377
          %395 = vmatmul.f32.gmra.mxu0 %v373
          %v396 = vpop.f32.mrf.mxu0
          %v397 = vadd.f32 0.0, %v396
          %398 = vdwg.mxu0
          %v400 = vrot.slane %v397, 1
          %v402 = vadd.f32 %v397, %v400
          %v403 = vxor.u32 %v402, 2147483648
          %v404 = vmul.f32 %v403, 1.442695
          %v405 = vpow.pop %v404
          %v406 = vadd.f32 %v405, 1.0
          %v407 = vrcp.pop %v406
          %v408 = vmul.f32 %v406, %v407
          %v409 = vsub.f32 1.0, %v408
          %v410 = vmul.f32 %v407, %v409
          %v411 = vadd.f32 %v407, %v410
          %vm412 = vweird.f32 %v406
          %vm413 = vweird.f32 %v407
          %vm414 = vmor %vm412, %vm413
          %v415 = vsel %vm414, %v407, %v411
          %v416 = vand.u32 2147483647, %v406
          %vm417 = vcmp.eq.f32.partialorder %v416, 8.507059e+37
          %v418 = vand.u32 %v406, 2147483648
          %v419 = vor.u32 1.1754944e-38, %v418
          %v420 = vsel %vm417, %v419, %v415
          %v421 = vmul.f32 1.0, %v420
          %vm422 = vcmask 253952
          %423 = vst.msk [vmem:[%s205] sm:$0x1] %vm422, %v421
        $region44: #{tpu_custom_call.1} parent=31 // pred_fallthru
          _
        %s424 = sand.u32 %s110, 1
        %s425 = scalar_lea.sflag [#allocation6], %s424
        %s426 = sand.u32 %s110, 1
        %s427 = scalar_lea.vmem [#allocation7], %s426
        // Predicated region
        $region45: #{tpu_custom_call.1} parent=31 // pred_check
          %p428 = pneg %p120
        $region46: #{tpu_custom_call.1} parent=31 // pred_check_branch
          %430 = sbr.rel (%p428) target = $region48
        $region47: #{tpu_custom_call.1} parent=31 // pred_region
          %432 = vsyncadd %s425, 0
          %s433 = scalar_lea.hbm %s3, %s24
          %s435 = sshll.u32 %s427, 4
          %s436 = int_to_ptr.vmem [resolvable:$true] %s435
          %s437 = sshll.u32 %s433, 4
          %s438 = int_to_ptr.hbm [resolvable:$true] %s437
          %440 = dma.vmem_to_hbm [thread:$0]  %s436, 16, %s438, %s425
        $region48: #{tpu_custom_call.1} parent=31 // pred_fallthru
          _
      $region32: #{tpu_custom_call.1} parent=5 // pred_fallthru
        _
      %p441 = scmp.le.s32.totalorder 2, %s15
      // Predicated region
      $region49: #{tpu_custom_call.1} parent=5 // pred_check
        %p442 = pneg %p441
      $region50: #{tpu_custom_call.1} parent=5 // pred_check_branch
        %444 = sbr.rel (%p442) target = $region52
      $region51: #{tpu_custom_call.1} parent=5 // pred_region
        %s445 = ssub.s32 %s15, 2
        // Predicated region
        $region53: #{tpu_custom_call.1} parent=51 // pred_check
          %p446 = pneg %p126
        $region54: #{tpu_custom_call.1} parent=51 // pred_check_branch
          %448 = sbr.rel (%p446) target = $region56
        $region55: #{tpu_custom_call.1} parent=51 // pred_region
          %s449 = sand.u32 %s111, 1
          %s450 = scalar_lea.sflag [#allocation6], %s449
          %s451 = sand.u32 %s111, 1
          %s452 = scalar_lea.vmem [#allocation7], %s451
          %454 = dma.done %s450, 16
        $region56: #{tpu_custom_call.1} parent=51 // pred_fallthru
          _
      $region52: #{tpu_custom_call.1} parent=5 // pred_fallthru
        _
    $region6: #{tpu_custom_call.1} parent=1 // loop_footer
      %s19 = sadd.s32 1, %s15
    $region7: #{tpu_custom_call.1} parent=1 // loop_footer_branch
      %14 = sbr.rel target = $region3
    $region8: #{tpu_custom_call.1} parent=1 // loop_exit
      _
    %455 = vsyncpa [#allocation5], 1
    %s456 = scalar_lea.sflag [#allocation5], 1
    %457 = vsyncpa %s456, 1
    %458 = vsyncpa [#allocation6], 1
    %s459 = scalar_lea.sflag [#allocation6], 1
    %460 = vsyncpa %s459, 1

</llo_original>
